<compile_context>
chip_gen: v6e
topology: v6e:2x2x1
jax: 0.10.0
libtpu: 0.0.40
codegen_flags: <defaults>
</compile_context>

<pallas_src>
import functools

import jax
import jax.numpy as jnp
import numpy as np
from jax.experimental import pallas as pl
from jax.experimental.pallas import tpu as pltpu


def _round_up(x, m):
    return ((x + m - 1) // m) * m


# ---------------------------------------------------------------------------
# Fused Pallas kernel: streamed dense layers + per-selected-layer word pooling
# ---------------------------------------------------------------------------


def _fused_kernel(gwid_ref, h0_ref, w_ref, b_ref, out_ref,
                  h_sc, assign_sc, inv_sc, *, sel_layers, wp, t):
    """One grid step = (batch b, layer l).

    gwid_ref : (1, 1, T) int32  word index per piece for batch b, -1 invalid.
    h0_ref   : (T, Dp)   f32    layer-0 hidden states for batch b (padded Dp).
    w_ref    : (1, Dp, Dp) bf16 dense weight of layer l (streamed per step).
    b_ref    : (1, 1, Dp)  f32  dense bias of layer l.
    out_ref  : (num_sel, 1, Wp, Dp) f32  pooled word embeddings for batch b
               (same block across the layer axis -> VMEM-resident accumulator).
    h_sc     : (T, Dp) f32      hidden-state accumulator across layers.
    assign_sc: (Wp, T) f32      piece->word one-hot (layer-invariant).
    inv_sc   : (Wp, 1) f32      1/count per word (layer-invariant).
    """
    l = pl.program_id(1)

    def pool_into(slab_idx, h_f32):
        # 0/1 assign is exact in bf16; MXU bf16 x bf16 -> f32 accumulation.
        pooled = jnp.dot(assign_sc[...].astype(jnp.bfloat16),
                         h_f32.astype(jnp.bfloat16),
                         preferred_element_type=jnp.float32) * inv_sc[...]
        out_ref[slab_idx, 0] = pooled

    @pl.when(l == 0)
    def _init():
        # Per-batch block-diagonal pooling metadata, built once (layer-invariant).
        gwid = gwid_ref[0]                                          # (1, T)
        rows = jax.lax.broadcasted_iota(jnp.int32, (wp, t), 0)      # (Wp, T)
        assign = (rows == gwid).astype(jnp.float32)                 # (Wp, T)
        counts = jnp.sum(assign, axis=-1, keepdims=True)            # (Wp, 1)
        inv_sc[...] = jnp.where(counts > 0.0,
                                1.0 / jnp.maximum(counts, 1.0), 0.0)
        assign_sc[...] = assign
        h0 = h0_ref[...]                                            # (T, Dp)
        h_sc[...] = h0
        for li, lsel in enumerate(sel_layers):      # static unroll (config)
            if lsel == 0:                           # hidden_states[0]
                pool_into(li, h0)

    # Dense layer l: bf16 MXU operands, f32 accumulation + elementwise.
    h = h_sc[...]                                                   # (T, Dp)
    y = jnp.dot(h.astype(jnp.bfloat16), w_ref[0],
                preferred_element_type=jnp.float32) + b_ref[0]
    h_new = jnp.tanh(y) + h              # synthetic "transformer layer"
    h_sc[...] = h_new

    for li, lsel in enumerate(sel_layers):           # static unroll
        if lsel >= 1:
            @pl.when(l == lsel - 1)
            def _pool(li=li, h_new=h_new):
                pool_into(li, h_new)


def fused_embed(gwid, h0, weights, biases, *, sel_layers, wp):
    """gwid:[B,1,T] i32, h0:[B*T,Dp] f32, weights:[L,Dp,Dp] bf16,
    biases:[L,1,Dp] f32 -> [num_sel, B, Wp, Dp] f32 pooled word embeddings.
    """
    B, _, t = gwid.shape
    bt, dp = h0.shape
    assert bt == B * t
    num_layers = int(weights.shape[0])
    num_sel = len(sel_layers)
    sel_layers = tuple(int(x) for x in sel_layers)
    # Every selected layer must be produced, otherwise its output slab would be
    # returned uninitialized.
    assert all(0 <= s <= num_layers for s in sel_layers), \
        f"selected layers {sel_layers} out of range for {num_layers} layers"

    kernel = functools.partial(_fused_kernel, sel_layers=sel_layers,
                               wp=int(wp), t=int(t))

    # VMEM budget: double-buffered input/output blocks + persistent scratch,
    # with generous headroom (blocks are padded to (8,128)/(16,128) tiles).
    in_blk = (8 * 128 * 4            # gwid block (padded)
              + t * dp * 4           # h0 block
              + dp * dp * 2          # weight block (bf16)
              + 8 * dp * 4)          # bias block (padded)
    out_blk = num_sel * wp * dp * 4
    scratch = t * dp * 4 + wp * _round_up(t, 128) * 4 + wp * 128 * 4
    total = 2 * (in_blk + out_blk) + scratch
    vmem_limit = min(4 * total + (4 << 20), 120 << 20)

    return pl.pallas_call(
        kernel,
        out_shape=jax.ShapeDtypeStruct((num_sel, B, wp, dp), jnp.float32),
        grid_spec=pltpu.PrefetchScalarGridSpec(
            num_scalar_prefetch=0,
            grid=(B, num_layers),
            in_specs=[
                pl.BlockSpec((1, 1, t), lambda b, l: (b, 0, 0)),
                pl.BlockSpec((t, dp), lambda b, l: (b, 0)),
                pl.BlockSpec((1, dp, dp), lambda b, l: (l, 0, 0)),
                pl.BlockSpec((1, 1, dp), lambda b, l: (l, 0, 0)),
            ],
            # Same block index across the layer axis -> written back once per
            # batch, stays VMEM-resident while layers stream.
            out_specs=pl.BlockSpec((num_sel, 1, wp, dp),
                                   lambda b, l: (0, b, 0, 0)),
            scratch_shapes=[
                pltpu.VMEM((t, dp), jnp.float32),     # hidden-state accumulator
                pltpu.VMEM((wp, t), jnp.float32),     # piece->word one-hot
                pltpu.VMEM((wp, 1), jnp.float32),     # 1/count
            ]),
        compiler_params=pltpu.CompilerParams(
            dimension_semantics=("parallel", "arbitrary"),
            vmem_limit_bytes=int(vmem_limit)),
    )(gwid, h0, weights, biases)


# ---------------------------------------------------------------------------
# Synthetic "EmbeddingModel" forward
# ---------------------------------------------------------------------------


class EmbeddingModelPallas:
    """Mirrors EmbeddingModel.forward semantics: per-layer hidden states ->
    wordpiece->word mean pooling per selected layer; returns
    (emb_layers, att_words); single-layer selection returns the array directly.
    """

    # TODO(synk): HF AutoTokenizer / AutoModel and the md5-keyed cache have no
    # Pallas equivalent; tokenization is synthesized via fixed word_id maps.

    def __init__(self, vocab, emb_dim, num_layers, layers, key):
        self.emb_dim = emb_dim
        self.num_layers = num_layers
        self._lm_layers = list(layers)
        self.dp = _round_up(emb_dim, 128)     # lane-dense hidden dim
        k_emb, k_w, k_b = jax.random.split(key, 3)
        emb = jax.random.normal(k_emb, (vocab, emb_dim), jnp.float32) * 0.1
        w = jax.random.normal(k_w, (num_layers, emb_dim, emb_dim),
                              jnp.float32) * 0.05
        b = jax.random.normal(k_b, (num_layers, 1, emb_dim),
                              jnp.float32) * 0.05
        pad = self.dp - emb_dim
        # Pre-pad (and pre-cast weights to bf16) ONCE, not on every forward.
        self.emb_table = jnp.pad(emb, ((0, 0), (0, pad)))                 # f32
        self.layer_w = jnp.pad(w, ((0, 0), (0, pad), (0, pad))).astype(
            jnp.bfloat16)                                                 # bf16
        self.layer_b = jnp.pad(b, ((0, 0), (0, 0), (0, pad)))             # f32

    def forward(self, input_ids, word_ids, special_mask, sentence_lens):
        """
        input_ids    : [B, T] int32   synthetic wordpiece ids
        word_ids     : [B, T] int32   word index of each piece, -1 for padding
        special_mask : [B, T] bool    True for special tokens ([CLS]/[SEP]/pad)
        sentence_lens: python list of word counts per sentence
        """
        B, T = input_ids.shape
        D = self.emb_dim
        Dp = self.dp
        W = int(max(sentence_lens))               # max_len, as in reduce()
        Wp = max(8, _round_up(W, 8))              # fixed bucket (no recompile)

        # --- glue: tokenization metadata -> per-batch word ids ---------------
        valid = (~special_mask) & (word_ids >= 0)                     # (B, T)
        gwid = jnp.where(valid, word_ids, -1).astype(jnp.int32)
        gwid = gwid.reshape(B, 1, T)

        # --- glue: embedding lookup (table pre-padded to Dp) -----------------
        h0 = self.emb_table[input_ids].reshape(B * T, Dp)

        # --- single fused Pallas kernel: streamed layers + pooling -----------
        out = fused_embed(gwid, h0, self.layer_w, self.layer_b,
                          sel_layers=self._lm_layers, wp=Wp)
        out = out[:, :, :W, :D]                        # (num_sel, B, W, D)

        att_words = jnp.any(
            (word_ids[:, None, :] == jnp.arange(W)[None, :, None])
            & valid[:, None, :],
            axis=-1,
        )                                                             # (B, W)

        emb_layers = [out[li] for li in range(len(self._lm_layers))]
        emb_layers = emb_layers if len(self._lm_layers) != 1 else emb_layers[0]
        return emb_layers, att_words


# ---------------------------------------------------------------------------
# Main
# ---------------------------------------------------------------------------

if __name__ == "__main__":
    key = jax.random.PRNGKey(0)

    B, T, D = 2, 16, 32          # batch, wordpiece seq len, hidden size
    VOCAB, NUM_LAYERS = 64, 2
    LAYERS = [1, 2]              # selected hidden-state layers

    k_model, k_ids = jax.random.split(key)
    model = EmbeddingModelPallas(VOCAB, D, NUM_LAYERS, LAYERS, k_model)

    # Deterministic synthetic tokenization.
    word_ids = np.full((B, T), -1, dtype=np.int32)
    special = np.zeros((B, T), dtype=bool)

    # sentence 0: [CLS] w0 w0 w1 w2 w2 w3 w4 [SEP] pad...  (5 words, 7 pieces)
    word_ids[0, 1:8] = [0, 0, 1, 2, 2, 3, 4]
    special[0, 0] = True
    special[0, 8:] = True        # [SEP] + padding

    # sentence 1: [CLS] w0 w1 w2 w3 w3 w4 w5 w6 w6 [SEP] pad... (7 words, 9 pieces)
    word_ids[1, 1:10] = [0, 1, 2, 3, 3, 4, 5, 6, 6]
    special[1, 0] = True
    special[1, 10:] = True       # [SEP] + padding

    sentence_lens = [5, 7]

    input_ids = jax.random.randint(k_ids, (B, T), 0, VOCAB, dtype=jnp.int32)
    word_ids_j = jnp.asarray(word_ids)
    special_j = jnp.asarray(special)

    emb_layers, att_words = model.forward(input_ids, word_ids_j, special_j,
                                          sentence_lens)
    emb_layers = [jax.block_until_ready(e) for e in emb_layers]
    att_words = jax.block_until_ready(att_words)

    # Reference check in plain numpy (weights taken at their bf16-stored
    # values; kernel additionally casts activations to bf16 at the MXU ->
    # compare with a modest tolerance).
    ids_np = np.asarray(input_ids)
    emb_np = np.asarray(model.emb_table)[:, :D]
    w_np_all = np.asarray(model.layer_w.astype(jnp.float32))[:, :D, :D]
    b_np_all = np.asarray(model.layer_b)[:, :, :D]

    states_ref = [emb_np[ids_np]]
    h = states_ref[0]
    for l in range(NUM_LAYERS):
        h = np.tanh(h @ w_np_all[l] + b_np_all[l]) + h
        states_ref.append(h)

    Wmax = max(sentence_lens)
    ok = True
    for li, layer_idx in enumerate(LAYERS):
        pieces = states_ref[layer_idx]
        ref = np.zeros((B, Wmax, D), np.float32)
        for bi in range(B):
            for wi in range(sentence_lens[bi]):
                sel = (word_ids[bi] == wi) & (~special[bi])
                ref[bi, wi] = pieces[bi][sel].mean(axis=0)
        ok &= np.allclose(np.asarray(emb_layers[li]), ref,
                          atol=1e-2, rtol=1e-2)
    ref_att = np.zeros((B, Wmax), bool)
    for bi in range(B):
        ref_att[bi, : sentence_lens[bi]] = True
    ok &= np.array_equal(np.asarray(att_words), ref_att)

    assert ok, "Pallas result mismatch vs reference"
    print("KERNEL_OK")
</pallas_src>

<mosaic_0001>
module attributes {stable_mosaic.version = 11 : i64} {
  func.func @_fused_kernel(%arg0: i32, %arg1: i32, %arg2: memref<1x1x16xi32, #tpu.memory_space<vmem>>, %arg3: memref<16x128xf32, #tpu.memory_space<vmem>>, %arg4: memref<1x128x128xbf16, #tpu.memory_space<vmem>>, %arg5: memref<1x1x128xf32, #tpu.memory_space<vmem>>, %arg6: memref<2x1x8x128xf32, #tpu.memory_space<vmem>>, %arg7: memref<16x128xf32, #tpu.memory_space<vmem>>, %arg8: memref<8x16xf32, #tpu.memory_space<vmem>>, %arg9: memref<8x1xf32, #tpu.memory_space<vmem>>) attributes {dimension_semantics = [#tpu.dimension_semantics<parallel>, #tpu.dimension_semantics<arbitrary>], iteration_bounds = array<i64: 2, 2>, scalar_prefetch = 0 : i64, scratch_operands = 3 : i64, tpu.core_type = #tpu.core_type<tc>, window_params = [{transform_indices = @transform_0, window_bounds = array<i64: 1, 1, 16>}, {transform_indices = @transform_1, window_bounds = array<i64: 16, 128>}, {transform_indices = @transform_2, window_bounds = array<i64: 1, 128, 128>}, {transform_indices = @transform_3, window_bounds = array<i64: 1, 1, 128>}, {transform_indices = @transform_4, window_bounds = array<i64: 2, 1, 8, 128>}]} {
    %c0_i32 = arith.constant 0 : i32
    %0 = arith.cmpi eq, %arg1, %c0_i32 : i32
    %1 = arith.extui %0 : i1 to i32
    %c0_i32_0 = arith.constant 0 : i32
    %2 = arith.cmpi ne, %1, %c0_i32_0 : i32
    scf.if %2 {
      %c0_13 = arith.constant 0 : index
      %c0_14 = arith.constant 0 : index
      %c0_15 = arith.constant 0 : index
      %21 = vector.load %arg2[%c0_13, %c0_14, %c0_15] : memref<1x1x16xi32, #tpu.memory_space<vmem>>, vector<1x1x16xi32>
      %22 = vector.shape_cast %21 : vector<1x1x16xi32> to vector<1x16xi32>
      %23 = tpu.iota {dimensions = array<i32: 0>} : vector<8x16xi32>
      %24 = vector.broadcast %22 : vector<1x16xi32> to vector<8x16xi32>
      %25 = arith.cmpi eq, %23, %24 : vector<8x16xi32>
      %26 = arith.extui %25 : vector<8x16xi1> to vector<8x16xi32>
      %27 = arith.sitofp %26 : vector<8x16xi32> to vector<8x16xf32>
      %cst_16 = arith.constant dense<0.000000e+00> : vector<8xf32>
      %28 = vector.multi_reduction <add>, %27, %cst_16 [1] : vector<8x16xf32> to vector<8xf32>
      %29 = vector.shape_cast %28 : vector<8xf32> to vector<8x1xf32>
      %cst_17 = arith.constant 0.000000e+00 : f32
      %30 = vector.broadcast %cst_17 : f32 to vector<8x1xf32>
      %31 = arith.cmpf ogt, %29, %30 : vector<8x1xf32>
      %cst_18 = arith.constant 1.000000e+00 : f32
      %32 = vector.broadcast %cst_18 : f32 to vector<8x1xf32>
      %33 = arith.maximumf %29, %32 : vector<8x1xf32>
      %cst_19 = arith.constant 1.000000e+00 : f32
      %34 = vector.broadcast %cst_19 : f32 to vector<8x1xf32>
      %35 = arith.divf %34, %33 : vector<8x1xf32>
      %cst_20 = arith.constant 0.000000e+00 : f32
      %36 = vector.broadcast %cst_20 : f32 to vector<8x1xf32>
      %37 = arith.select %31, %35, %36 : vector<8x1xi1>, vector<8x1xf32>
      %c0_21 = arith.constant 0 : index
      %c0_22 = arith.constant 0 : index
      %38 = vector.load %arg9[%c0_21, %c0_22] : memref<8x1xf32, #tpu.memory_space<vmem>>, vector<8x1xf32>
      tpu.vector_store %arg9[%c0_21, %c0_22], %37 {strides = array<i32>} : memref<8x1xf32, #tpu.memory_space<vmem>>, vector<8x1xf32>,
      %c0_23 = arith.constant 0 : index
      %c0_24 = arith.constant 0 : index
      %39 = vector.load %arg8[%c0_23, %c0_24] : memref<8x16xf32, #tpu.memory_space<vmem>>, vector<8x16xf32>
      tpu.vector_store %arg8[%c0_23, %c0_24], %27 {strides = array<i32>} : memref<8x16xf32, #tpu.memory_space<vmem>>, vector<8x16xf32>,
      %c0_25 = arith.constant 0 : index
      %c0_26 = arith.constant 0 : index
      %40 = vector.load %arg3[%c0_25, %c0_26] : memref<16x128xf32, #tpu.memory_space<vmem>>, vector<16x128xf32>
      %c0_27 = arith.constant 0 : index
      %c0_28 = arith.constant 0 : index
      %41 = vector.load %arg7[%c0_27, %c0_28] : memref<16x128xf32, #tpu.memory_space<vmem>>, vector<16x128xf32>
      tpu.vector_store %arg7[%c0_27, %c0_28], %40 {strides = array<i32>} : memref<16x128xf32, #tpu.memory_space<vmem>>, vector<16x128xf32>,
    } else {
    }
    %c0 = arith.constant 0 : index
    %c0_1 = arith.constant 0 : index
    %3 = vector.load %arg7[%c0, %c0_1] : memref<16x128xf32, #tpu.memory_space<vmem>>, vector<16x128xf32>
    %4 = arith.truncf %3 : vector<16x128xf32> to vector<16x128xbf16>
    %c0_2 = arith.constant 0 : index
    %c0_3 = arith.constant 0 : index
    %c0_4 = arith.constant 0 : index
    %5 = vector.load %arg4[%c0_2, %c0_3, %c0_4] : memref<1x128x128xbf16, #tpu.memory_space<vmem>>, vector<1x128x128xbf16>
    %6 = vector.shape_cast %5 : vector<1x128x128xbf16> to vector<128x128xbf16>
    %cst = arith.constant dense<0.000000e+00> : vector<16x128xf32>
    %7 = tpu.matmul %4, %6, %cst {dimension_numbers = #tpu.dot_dimension_numbers<[1], [0], [0], [1], [0, 0, 1, 1], [], []>} : vector<16x128xbf16>, vector<128x128xbf16>, vector<16x128xf32> -> vector<16x128xf32>
    %c0_5 = arith.constant 0 : index
    %c0_6 = arith.constant 0 : index
    %c0_7 = arith.constant 0 : index
    %8 = vector.load %arg5[%c0_5, %c0_6, %c0_7] : memref<1x1x128xf32, #tpu.memory_space<vmem>>, vector<1x1x128xf32>
    %9 = vector.shape_cast %8 : vector<1x1x128xf32> to vector<1x128xf32>
    %10 = vector.broadcast %9 : vector<1x128xf32> to vector<16x128xf32>
    %11 = arith.addf %7, %10 : vector<16x128xf32>
    %12 = math.tanh %11 : vector<16x128xf32>
    %13 = arith.addf %12, %3 : vector<16x128xf32>
    %c0_8 = arith.constant 0 : index
    %c0_9 = arith.constant 0 : index
    %14 = vector.load %arg7[%c0_8, %c0_9] : memref<16x128xf32, #tpu.memory_space<vmem>>, vector<16x128xf32>
    tpu.vector_store %arg7[%c0_8, %c0_9], %13 {strides = array<i32>} : memref<16x128xf32, #tpu.memory_space<vmem>>, vector<16x128xf32>,
    %c0_i32_10 = arith.constant 0 : i32
    %15 = arith.cmpi eq, %arg1, %c0_i32_10 : i32
    %16 = arith.extui %15 : i1 to i32
    %c0_i32_11 = arith.constant 0 : i32
    %17 = arith.cmpi ne, %16, %c0_i32_11 : i32
    scf.if %17 {
      %c0_13 = arith.constant 0 : index
      %c0_14 = arith.constant 0 : index
      %21 = vector.load %arg8[%c0_13, %c0_14] : memref<8x16xf32, #tpu.memory_space<vmem>>, vector<8x16xf32>
      %22 = arith.truncf %21 : vector<8x16xf32> to vector<8x16xbf16>
      %23 = arith.truncf %13 : vector<16x128xf32> to vector<16x128xbf16>
      %cst_15 = arith.constant dense<0.000000e+00> : vector<8x128xf32>
      %24 = tpu.matmul %22, %23, %cst_15 {dimension_numbers = #tpu.dot_dimension_numbers<[1], [0], [0], [1], [0, 0, 1, 1], [], []>} : vector<8x16xbf16>, vector<16x128xbf16>, vector<8x128xf32> -> vector<8x128xf32>
      %c0_16 = arith.constant 0 : index
      %c0_17 = arith.constant 0 : index
      %25 = vector.load %arg9[%c0_16, %c0_17] : memref<8x1xf32, #tpu.memory_space<vmem>>, vector<8x1xf32>
      %26 = vector.broadcast %25 : vector<8x1xf32> to vector<8x128xf32>
      %27 = arith.mulf %24, %26 : vector<8x128xf32>
      %c0_18 = arith.constant 0 : index
      %c0_19 = arith.constant 0 : index
      %c0_20 = arith.constant 0 : index
      %c0_21 = arith.constant 0 : index
      %28 = vector.load %arg6[%c0_18, %c0_19, %c0_20, %c0_21] : memref<2x1x8x128xf32, #tpu.memory_space<vmem>>, vector<1x1x8x128xf32>
      %29 = vector.shape_cast %28 : vector<1x1x8x128xf32> to vector<8x128xf32>
      %30 = vector.shape_cast %27 : vector<8x128xf32> to vector<1x1x8x128xf32>
      tpu.vector_store %arg6[%c0_18, %c0_19, %c0_20, %c0_21], %30 {strides = array<i32>} : memref<2x1x8x128xf32, #tpu.memory_space<vmem>>, vector<1x1x8x128xf32>,
    } else {
    }
    %c1_i32 = arith.constant 1 : i32
    %18 = arith.cmpi eq, %arg1, %c1_i32 : i32
    %19 = arith.extui %18 : i1 to i32
    %c0_i32_12 = arith.constant 0 : i32
    %20 = arith.cmpi ne, %19, %c0_i32_12 : i32
    scf.if %20 {
      %c0_13 = arith.constant 0 : index
      %c0_14 = arith.constant 0 : index
      %21 = vector.load %arg8[%c0_13, %c0_14] : memref<8x16xf32, #tpu.memory_space<vmem>>, vector<8x16xf32>
      %22 = arith.truncf %21 : vector<8x16xf32> to vector<8x16xbf16>
      %23 = arith.truncf %13 : vector<16x128xf32> to vector<16x128xbf16>
      %cst_15 = arith.constant dense<0.000000e+00> : vector<8x128xf32>
      %24 = tpu.matmul %22, %23, %cst_15 {dimension_numbers = #tpu.dot_dimension_numbers<[1], [0], [0], [1], [0, 0, 1, 1], [], []>} : vector<8x16xbf16>, vector<16x128xbf16>, vector<8x128xf32> -> vector<8x128xf32>
      %c0_16 = arith.constant 0 : index
      %c0_17 = arith.constant 0 : index
      %25 = vector.load %arg9[%c0_16, %c0_17] : memref<8x1xf32, #tpu.memory_space<vmem>>, vector<8x1xf32>
      %26 = vector.broadcast %25 : vector<8x1xf32> to vector<8x128xf32>
      %27 = arith.mulf %24, %26 : vector<8x128xf32>
      %c1 = arith.constant 1 : index
      %c0_18 = arith.constant 0 : index
      %c0_19 = arith.constant 0 : index
      %c0_20 = arith.constant 0 : index
      %28 = vector.load %arg6[%c1, %c0_18, %c0_19, %c0_20] : memref<2x1x8x128xf32, #tpu.memory_space<vmem>>, vector<1x1x8x128xf32>
      %29 = vector.shape_cast %28 : vector<1x1x8x128xf32> to vector<8x128xf32>
      %30 = vector.shape_cast %27 : vector<8x128xf32> to vector<1x1x8x128xf32>
      tpu.vector_store %arg6[%c1, %c0_18, %c0_19, %c0_20], %30 {strides = array<i32>} : memref<2x1x8x128xf32, #tpu.memory_space<vmem>>, vector<1x1x8x128xf32>,
    } else {
    }
    return
  }
  func.func @transform_0(%arg0: i32, %arg1: i32) -> (i32, i32, i32) {
    %c0_i32 = arith.constant 0 : i32
    %c0_i32_0 = arith.constant 0 : i32
    %c0_i32_1 = arith.constant 0 : i32
    return %arg0, %c0_i32, %c0_i32_0 : i32, i32, i32
  }
  func.func @transform_1(%arg0: i32, %arg1: i32) -> (i32, i32) {
    %c0_i32 = arith.constant 0 : i32
    %c0_i32_0 = arith.constant 0 : i32
    return %arg0, %c0_i32 : i32, i32
  }
  func.func @transform_2(%arg0: i32, %arg1: i32) -> (i32, i32, i32) {
    %c0_i32 = arith.constant 0 : i32
    %c0_i32_0 = arith.constant 0 : i32
    %c0_i32_1 = arith.constant 0 : i32
    return %arg1, %c0_i32, %c0_i32_0 : i32, i32, i32
  }
  func.func @transform_3(%arg0: i32, %arg1: i32) -> (i32, i32, i32) {
    %c0_i32 = arith.constant 0 : i32
    %c0_i32_0 = arith.constant 0 : i32
    %c0_i32_1 = arith.constant 0 : i32
    return %arg1, %c0_i32, %c0_i32_0 : i32, i32, i32
  }
  func.func @transform_4(%arg0: i32, %arg1: i32) -> (i32, i32, i32, i32) {
    %c0_i32 = arith.constant 0 : i32
    %c0_i32_0 = arith.constant 0 : i32
    %c0_i32_1 = arith.constant 0 : i32
    %c0_i32_2 = arith.constant 0 : i32
    return %c0_i32, %arg0, %c0_i32_0, %c0_i32_1 : i32, i32, i32, i32
  }
}

</mosaic_0001>

<llo_original>
// kernel: tpu_custom_call.1
$region0: #{tpu_custom_call.1}
  #allocation0 [shape = 'u32[]', space=smem, size = 0x4, offset = 0x4, fixed_abs, tag = 'smem constant byte address 0x4 - core index']
  #allocation1 [shape = 'u32[144,128]{1,0:T(1,128)}', space=vmem, size = 0x12000, scoped, tag = 'internal scratch']
  #allocation2 [shape = 'f32[16,128]{1,0:T(8,128)}', space=vmem, size = 0x2000, scoped, tag = 'scratch operand']
  #allocation3 [shape = 'f32[8,16]{1,0:T(8,128)}', space=vmem, size = 0x1000, scoped, tag = 'scratch operand']
  #allocation4 [shape = 'f32[8,1]{1,0:T(8,128)}', space=vmem, size = 0x1000, scoped, tag = 'scratch operand']
  %s0 = inlined_call_operand.hbm [shape: s32[2,1,16], index: 0, kind: input, shape index: {}]
  %s1 = inlined_call_operand.hbm [shape: f32[32,128], index: 1, kind: input, shape index: {}]
  %s2 = inlined_call_operand.hbm [shape: bf16[2,128,128], index: 2, kind: input, shape index: {}]
  %s3 = inlined_call_operand.vmem [shape: f32[2,1,128], index: 3, kind: input, shape index: {}]
  %s4 = inlined_call_operand.hbm [shape: f32[2,2,8,128], index: 4, kind: output, shape index: {}]
  %s5 = sld [smem:[#allocation0]]
  $region73: #{tpu_custom_call.1} parent=0
    _
  %s7 = ssub.s32 1, %s5
  %s8 = scalar_select 0, %s7, %s5
  $region1: #{tpu_custom_call.1} parent=0
    #allocation5 [shape = 'u8[1024]{0}', space=vmem, size = 0x400, scoped, tag = 'input window, operand 0']
    #allocation6 [shape = 's32[2]{0}', space=sflag, size = 0x8, scoped, tag = 'scoped memory for tpu_custom_call.1']
    #allocation7 [shape = 's32[2]{0}', space=sflag, size = 0x8, scoped, tag = 'scoped memory for tpu_custom_call.1']
    #allocation8 [shape = 'u8[16384]{0}', space=vmem, size = 0x4000, scoped, tag = 'input window, operand 1']
    #allocation9 [shape = 's32[2]{0}', space=sflag, size = 0x8, scoped, tag = 'scoped memory for tpu_custom_call.1']
    #allocation10 [shape = 'u8[65536]{0}', space=vmem, size = 0x10000, scoped, tag = 'input window, operand 2']
    #allocation11 [shape = 'u8[16384]{0}', space=vmem, size = 0x4000, scoped, tag = 'output window, operand 0']
    %9 = vsyncpa [#allocation6], 0
    %s10 = scalar_lea.sflag [#allocation6], 1
    %11 = vsyncpa %s10, 0
    %12 = vsyncpa [#allocation9], 0
    %s13 = scalar_lea.sflag [#allocation9], 1
    %14 = vsyncpa %s13, 0
    %15 = vsyncpa [#allocation7], 0
    %s16 = scalar_lea.sflag [#allocation7], 1
    %17 = vsyncpa %s16, 0
    loop: start=0, step=1, limit=6
    $region2: #{tpu_custom_call.1} parent=1 // loop_pre_header
      _
    $region3: #{tpu_custom_call.1} parent=1 // loop_header
      %s19 = sphi 0, %s23
      %p20 = scmp.ge.s32.totalorder %s19, 6
      %s26 = sphi 0, %s38
      %s27 = sphi 0, %s34
      %s28 = sphi 0, %s26
      %s29 = sphi 0, %s27
      %s30 = sphi 0, %s28
      %s31 = sphi 0, %s29
      %s41 = sphi 0, %s43
      %s44 = sphi 0, %s41
      %s45 = sphi 0, %s44
      %s61 = sphi 0, %s45
      %s67 = sphi 0, %s69
      %s70 = sphi 0, %s67
      %s71 = sphi 0, %s70
      %s87 = sphi 0, %s71
      %s93 = sphi 0, %s95
      %s96 = sphi 0, %s93
      %s97 = sphi 0, %s96
      %s113 = sphi 0, %s97
      %s119 = sphi 0, %s121
      %s122 = sphi 0, %s119
      %s123 = sphi 0, %s122
      %s139 = sphi 0, %s123
      %s145 = sphi 0, %s147
      %s148 = sphi 0, %s145
      %s149 = sphi 0, %s148
      %s165 = sphi 0, %s149
    $region4: #{tpu_custom_call.1} parent=1 // loop_header_branch
      %22 = sbr.rel (%p20) target = $region8
    $region5: #{tpu_custom_call.1} parent=1 // loop_body
      %s24 = ssub.s32 %s19, 1
      %s25 = ssub.s32 %s19, 2
      %s32 = sadd.s32 1, %s27
      %p33 = scmp.ge.s32.totalorder %s32, 2
      %s34 = scalar_select %p33, 0, %s32
      %s35 = sadd.s32 1, %s26
      %s36 = scalar_select %p33, %s35, %s26
      %p37 = scmp.ge.s32.totalorder %s36, 2
      %s38 = scalar_select %p37, 0, %s36
      %s39 = ssub.s32 %s26, %s38
      %p40 = scmp.eq.s32.totalorder %s39, 0
      %s42 = sadd.s32 %s41, 1
      %s43 = scalar_select %p40, %s41, %s42
      %p46 = pneg %p40
      %p47 = scmp.eq.s32.totalorder %s19, 3
      %p48 = por %p46, %p47
      %p49 = scmp.ne.s32.totalorder %s41, %s44
      %p50 = scmp.eq.s32.totalorder %s19, 0
      %p51 = por %p49, %p50
      %p52 = scmp.ne.s32.totalorder %s41, %s44
      %p53 = scmp.eq.s32.totalorder %s24, 3
      %p54 = por %p52, %p53
      %p55 = scmp.ne.s32.totalorder %s44, %s45
      %p56 = scmp.eq.s32.totalorder %s24, 0
      %p57 = por %p55, %p56
      %p58 = scmp.ne.s32.totalorder %s44, %s45
      %p59 = scmp.eq.s32.totalorder %s25, 3
      %p60 = por %p58, %p59
      %p62 = scmp.ne.s32.totalorder %s45, %s61
      %p63 = scmp.eq.s32.totalorder %s25, 0
      %p64 = por %p62, %p63
      %s65 = ssub.s32 %s26, %s38
      %p66 = scmp.eq.s32.totalorder %s65, 0
      %s68 = sadd.s32 %s67, 1
      %s69 = scalar_select %p66, %s67, %s68
      %p72 = pneg %p66
      %p73 = scmp.eq.s32.totalorder %s19, 3
      %p74 = por %p72, %p73
      %p75 = scmp.ne.s32.totalorder %s67, %s70
      %p76 = scmp.eq.s32.totalorder %s19, 0
      %p77 = por %p75, %p76
      %p78 = scmp.ne.s32.totalorder %s67, %s70
      %p79 = scmp.eq.s32.totalorder %s24, 3
      %p80 = por %p78, %p79
      %p81 = scmp.ne.s32.totalorder %s70, %s71
      %p82 = scmp.eq.s32.totalorder %s24, 0
      %p83 = por %p81, %p82
      %p84 = scmp.ne.s32.totalorder %s70, %s71
      %p85 = scmp.eq.s32.totalorder %s25, 3
      %p86 = por %p84, %p85
      %p88 = scmp.ne.s32.totalorder %s71, %s87
      %p89 = scmp.eq.s32.totalorder %s25, 0
      %p90 = por %p88, %p89
      %s91 = ssub.s32 %s27, %s34
      %p92 = scmp.eq.s32.totalorder %s91, 0
      %s94 = sadd.s32 %s93, 1
      %s95 = scalar_select %p92, %s93, %s94
      %p98 = pneg %p92
      %p99 = scmp.eq.s32.totalorder %s19, 3
      %p100 = por %p98, %p99
      %p101 = scmp.ne.s32.totalorder %s93, %s96
      %p102 = scmp.eq.s32.totalorder %s19, 0
      %p103 = por %p101, %p102
      %p104 = scmp.ne.s32.totalorder %s93, %s96
      %p105 = scmp.eq.s32.totalorder %s24, 3
      %p106 = por %p104, %p105
      %p107 = scmp.ne.s32.totalorder %s96, %s97
      %p108 = scmp.eq.s32.totalorder %s24, 0
      %p109 = por %p107, %p108
      %p110 = scmp.ne.s32.totalorder %s96, %s97
      %p111 = scmp.eq.s32.totalorder %s25, 3
      %p112 = por %p110, %p111
      %p114 = scmp.ne.s32.totalorder %s97, %s113
      %p115 = scmp.eq.s32.totalorder %s25, 0
      %p116 = por %p114, %p115
      %s117 = ssub.s32 %s27, %s34
      %p118 = scmp.eq.s32.totalorder %s117, 0
      %s120 = sadd.s32 %s119, 1
      %s121 = scalar_select %p118, %s119, %s120
      %p124 = pneg %p118
      %p125 = scmp.eq.s32.totalorder %s19, 3
      %p126 = por %p124, %p125
      %p127 = scmp.ne.s32.totalorder %s119, %s122
      %p128 = scmp.eq.s32.totalorder %s19, 0
      %p129 = por %p127, %p128
      %p130 = scmp.ne.s32.totalorder %s119, %s122
      %p131 = scmp.eq.s32.totalorder %s24, 3
      %p132 = por %p130, %p131
      %p133 = scmp.ne.s32.totalorder %s122, %s123
      %p134 = scmp.eq.s32.totalorder %s24, 0
      %p135 = por %p133, %p134
      %p136 = scmp.ne.s32.totalorder %s122, %s123
      %p137 = scmp.eq.s32.totalorder %s25, 3
      %p138 = por %p136, %p137
      %p140 = scmp.ne.s32.totalorder %s123, %s139
      %p141 = scmp.eq.s32.totalorder %s25, 0
      %p142 = por %p140, %p141
      %s143 = ssub.s32 %s26, %s38
      %p144 = scmp.eq.s32.totalorder %s143, 0
      %s146 = sadd.s32 %s145, 1
      %s147 = scalar_select %p144, %s145, %s146
      %p150 = pneg %p144
      %p151 = scmp.eq.s32.totalorder %s19, 3
      %p152 = por %p150, %p151
      %p153 = scmp.ne.s32.totalorder %s145, %s148
      %p154 = scmp.eq.s32.totalorder %s19, 0
      %p155 = por %p153, %p154
      %p156 = scmp.ne.s32.totalorder %s145, %s148
      %p157 = scmp.eq.s32.totalorder %s24, 3
      %p158 = por %p156, %p157
      %p159 = scmp.ne.s32.totalorder %s148, %s149
      %p160 = scmp.eq.s32.totalorder %s24, 0
      %p161 = por %p159, %p160
      %p162 = scmp.ne.s32.totalorder %s148, %s149
      %p163 = scmp.eq.s32.totalorder %s25, 3
      %p164 = por %p162, %p163
      %p166 = scmp.ne.s32.totalorder %s149, %s165
      %p167 = scmp.eq.s32.totalorder %s25, 0
      %p168 = por %p166, %p167
      %p169 = scmp.le.s32.totalorder 1, %s19
      %p170 = scmp.lt.s32.totalorder %s19, 5
      %p171 = pnand %p169, %p170
      %p172 = pneg %p171
      // Predicated region
      $region9: #{tpu_custom_call.1} parent=5 // pred_check
        _
      $region10: #{tpu_custom_call.1} parent=5 // pred_check_branch
        %174 = sbr.rel (%p171) target = $region12
      $region11: #{tpu_custom_call.1} parent=5 // pred_region
        %s175 = ssub.s32 %s19, 1
      $region12: #{tpu_custom_call.1} parent=5 // pred_fallthru
        _
      %p176 = scmp.lt.s32.totalorder %s19, 4
      // Predicated region
      $region13: #{tpu_custom_call.1} parent=5 // pred_check
        %p177 = pneg %p176
      $region14: #{tpu_custom_call.1} parent=5 // pred_check_branch
        %179 = sbr.rel (%p177) target = $region16
      $region15: #{tpu_custom_call.1} parent=5 // pred_region
        // Predicated region
        $region17: #{tpu_custom_call.1} parent=15 // pred_check
          %p180 = pneg %p51
        $region18: #{tpu_custom_call.1} parent=15 // pred_check_branch
          %182 = sbr.rel (%p180) target = $region20
        $region19: #{tpu_custom_call.1} parent=15 // pred_region
          %s183 = sand.u32 %s41, 1
          %s184 = scalar_lea.sflag [#allocation6], %s183
          %s185 = sand.u32 %s41, 1
          %s186 = scalar_lea.vmem [#allocation5], %s185
          %s188 = ssub.s32 16, 16
          %189 = vsyncadd %s184, %s188
          %s190 = smul.addr %s26, 16
          %s191 = scalar_lea.hbm %s0, %s190
          %s193 = sshll.u32 %s186, 4
          %s194 = int_to_ptr.vmem [resolvable:$true] %s193
          %196 = dma.hbm_to_vmem [thread:$0]  %s191, 16, %s194, %s184
        $region20: #{tpu_custom_call.1} parent=15 // pred_fallthru
          _
        // Predicated region
        $region21: #{tpu_custom_call.1} parent=15 // pred_check
          %p197 = pneg %p77
        $region22: #{tpu_custom_call.1} parent=15 // pred_check_branch
          %199 = sbr.rel (%p197) target = $region24
        $region23: #{tpu_custom_call.1} parent=15 // pred_region
          %s200 = sand.u32 %s19, 1
          %s201 = scalar_lea.sflag [#allocation9], %s200
          %s202 = sand.u32 %s67, 1
          %s203 = smul.addr %s202, 16
          %s204 = scalar_lea.vmem [#allocation8], %s203
          %s205 = smul.u32 2, %s26
          %s207 = ssub.s32 256, 256
          %208 = vsyncadd %s201, %s207
          %s209 = smul.addr %s205, 128
          %s210 = scalar_lea.hbm %s1, %s209
          %s211 = sshll.u32 %s204, 4
          %s212 = int_to_ptr.vmem [resolvable:$true] %s211
          %217 = dma.hbm_to_vmem [thread:$0]  %s210, 256, %s212, %s201, 128, 128, 8
        $region24: #{tpu_custom_call.1} parent=15 // pred_fallthru
          _
        // Predicated region
        $region25: #{tpu_custom_call.1} parent=15 // pred_check
          %p218 = pneg %p103
        $region26: #{tpu_custom_call.1} parent=15 // pred_check_branch
          %220 = sbr.rel (%p218) target = $region28
        $region27: #{tpu_custom_call.1} parent=15 // pred_region
          %s221 = sand.u32 %s19, 1
          %s222 = scalar_lea.sflag [#allocation9], %s221
          %s223 = sand.u32 %s93, 1
          %s224 = smul.addr %s223, 64
          %s225 = scalar_lea.vmem [#allocation10], %s224
          %s227 = ssub.s32 1024, 1024
          %228 = vsyncadd %s222, %s227
          %s229 = smul.addr %s27, 16
          %s230 = smul.addr %s229, 64
          %s231 = scalar_lea.hbm %s2, %s230
          %s232 = sshll.u32 %s225, 4
          %s233 = int_to_ptr.vmem [resolvable:$true] %s232
          %238 = dma.hbm_to_vmem [thread:$0]  %s231, 1024, %s233, %s222, 64, 64, 4
        $region28: #{tpu_custom_call.1} parent=15 // pred_fallthru
          _
        // Predicated region
        $region29: #{tpu_custom_call.1} parent=15 // pred_check
          %p239 = pneg %p129
        $region30: #{tpu_custom_call.1} parent=15 // pred_check_branch
          %241 = sbr.rel (%p239) target = $region32
        $region31: #{tpu_custom_call.1} parent=15 // pred_region
          %p242 = scmp.lt.s32.totalorder %s27, 1
          %s243 = scalar_select %p242, %s27, 1
          %s244 = scalar_lea.vmem %s3, %s243
        $region32: #{tpu_custom_call.1} parent=15 // pred_fallthru
          _
      $region16: #{tpu_custom_call.1} parent=5 // pred_fallthru
        _
      %p245 = scmp.le.s32.totalorder 1, %s19
      %p246 = scmp.lt.s32.totalorder %s19, 5
      %p247 = pnand %p245, %p246
      %p248 = pneg %p247
      // Predicated region
      $region33: #{tpu_custom_call.1} parent=5 // pred_check
        _
      $region34: #{tpu_custom_call.1} parent=5 // pred_check_branch
        %250 = sbr.rel (%p247) target = $region36
      $region35: #{tpu_custom_call.1} parent=5 // pred_region
        %s251 = ssub.s32 %s19, 1
        %s252 = sand.u32 %s44, 1
        %s253 = scalar_lea.sflag [#allocation6], %s252
        %s254 = sand.u32 %s44, 1
        %s255 = scalar_lea.vmem [#allocation5], %s254
        // Predicated region
        $region37: #{tpu_custom_call.1} parent=35 // pred_check
          %p256 = pneg %p57
        $region38: #{tpu_custom_call.1} parent=35 // pred_check_branch
          %258 = sbr.rel (%p256) target = $region40
        $region39: #{tpu_custom_call.1} parent=35 // pred_region
          %259 = dma.done %s253, 16
        $region40: #{tpu_custom_call.1} parent=35 // pred_fallthru
          _
        %s260 = sand.u32 %s24, 1
        %s261 = scalar_lea.sflag [#allocation9], %s260
        %s262 = sand.u32 %s70, 1
        %s263 = smul.addr %s262, 16
        %s264 = scalar_lea.vmem [#allocation8], %s263
        // Predicated region
        $region41: #{tpu_custom_call.1} parent=35 // pred_check
          %p265 = pneg %p83
        $region42: #{tpu_custom_call.1} parent=35 // pred_check_branch
          %267 = sbr.rel (%p265) target = $region44
        $region43: #{tpu_custom_call.1} parent=35 // pred_region
          %268 = dma.done %s261, 256
        $region44: #{tpu_custom_call.1} parent=35 // pred_fallthru
          _
        %s269 = sand.u32 %s24, 1
        %s270 = scalar_lea.sflag [#allocation9], %s269
        %s271 = sand.u32 %s96, 1
        %s272 = smul.addr %s271, 64
        %s273 = scalar_lea.vmem [#allocation10], %s272
        // Predicated region
        $region45: #{tpu_custom_call.1} parent=35 // pred_check
          %p274 = pneg %p109
        $region46: #{tpu_custom_call.1} parent=35 // pred_check_branch
          %276 = sbr.rel (%p274) target = $region48
        $region47: #{tpu_custom_call.1} parent=35 // pred_region
          %277 = dma.done %s270, 1024
        $region48: #{tpu_custom_call.1} parent=35 // pred_fallthru
          _
        %s278 = sand.u32 %s44, 1
        %s279 = scalar_lea.sflag [#allocation6], %s278
        %s280 = sand.u32 %s44, 1
        %s281 = scalar_lea.vmem [#allocation5], %s280
        %p282 = pneg %p57
        %p283 = pneg %p54
        %s284 = sand.u32 %s24, 1
        %s285 = scalar_lea.sflag [#allocation9], %s284
        %s286 = sand.u32 %s70, 1
        %s287 = smul.addr %s286, 16
        %s288 = scalar_lea.vmem [#allocation8], %s287
        %p289 = pneg %p83
        %p290 = pneg %p80
        %s291 = sand.u32 %s24, 1
        %s292 = scalar_lea.sflag [#allocation9], %s291
        %s293 = sand.u32 %s96, 1
        %s294 = smul.addr %s293, 64
        %s295 = scalar_lea.vmem [#allocation10], %s294
        %p296 = pneg %p109
        %p297 = pneg %p106
        %p298 = scmp.lt.s32.totalorder %s29, 1
        %s299 = scalar_select %p298, %s29, 1
        %s300 = scalar_lea.vmem %s3, %s299
        %p301 = pneg %p135
        %p302 = pneg %p132
        %p303 = pneg %p161
        %p304 = pneg %p158
        %s305 = sand.u32 %s148, 1
        %s306 = scalar_lea.sflag [#allocation7], %s305
        %s307 = sand.u32 %s148, 1
        %s308 = smul.addr %s307, 16
        %s309 = scalar_lea.vmem [#allocation11], %s308
        %s310 = smul.u32 2, %s28
        %p311 = scmp.lt.s32.totalorder %s29, 1
        %s312 = scalar_select %p311, %s29, 1
        %s313 = scalar_lea.vmem %s3, %s312
        %p315 = scmp.eq.s32.totalorder %s29, 0
        // Predicated region
        $region49: #{tpu_custom_call.1} parent=35 // pred_check
          %p316 = pneg %p315
        $region50: #{tpu_custom_call.1} parent=35 // pred_check_branch
          %318 = sbr.rel (%p316) target = $region52
        $region51: #{tpu_custom_call.1} parent=35 // pred_region
          %v319 = vld [vmem:[%s255] sm:$0x1]
          %v320 = vlaneseq
          %v321 = vshrl.u32 %v320, 7
          %v322 = vlaneseq
          %v323 = vshrl.u32 %v322, 7
          %v324 = vsub.s32 0, %v323
          %v325 = vrot.slane %v319, %v324
          %vm326 = vcmp.eq.s32.totalorder %v321, %v325
          %v327 = vsel %vm326, 1, 0
          %v328 = vcvt.s32.f32 %v327
          %vm329 = vcmask 130048
          %v330 = vsel %vm329, %v328, 0.0
          %331 = vadd.xlane.f32.xlu0 %v330
          %v332 = vpop.xlane.xlu0 %331
          %vm333 = vcmp.gt.f32.partialorder %v332, 0.0
          %v334 = vmax.f32 %v332, 1.0
          %v335 = vrcp.pop %v334
          %v336 = vmul.f32 1.0, %v335
          %v337 = vsel %vm333, %v336, 0.0
          %vm338 = vcmask 7168
          %339 = vst.msk [vmem:[#allocation4] sm:$0xff] %vm338, %v337
          %340 = vst.msk [vmem:[#allocation3] sm:$0xff] %vm329, %v328
          %v341 = vld [vmem:[%s264] sm:$0xff]
          %v342 = vld [vmem:[%s264 + $0x8] sm:$0xff]
          %343 = vst [vmem:[#allocation2] sm:$0xff] %v341
          %344 = vst [vmem:[#allocation2 + $0x8] sm:$0xff] %v342
        $region52: #{tpu_custom_call.1} parent=35 // pred_fallthru
          _
        %v345 = vld [vmem:[#allocation2] sm:$0xff]
        %v346 = vld [vmem:[#allocation2 + $0x8] sm:$0xff]
        %v347 = vpack.c.bf16 %v346, %v345
        %v348 = vld [vmem:[%s273] sm:$0xf]
        %v349 = vld [vmem:[%s273 + $0x4] sm:$0xf]
        %v350 = vld [vmem:[%s273 + $0x8] sm:$0xf]
        %v351 = vld [vmem:[%s273 + $0xc] sm:$0xf]
        %v352 = vld [vmem:[%s273 + $0x10] sm:$0xf]
        %v353 = vld [vmem:[%s273 + $0x14] sm:$0xf]
        %v354 = vld [vmem:[%s273 + $0x18] sm:$0xf]
        %v355 = vld [vmem:[%s273 + $0x1c] sm:$0xf]
        %v356 = vld [vmem:[%s273 + $0x20] sm:$0xf]
        %v357 = vld [vmem:[%s273 + $0x24] sm:$0xf]
        %v358 = vld [vmem:[%s273 + $0x28] sm:$0xf]
        %v359 = vld [vmem:[%s273 + $0x2c] sm:$0xf]
        %v360 = vld [vmem:[%s273 + $0x30] sm:$0xf]
        %v361 = vld [vmem:[%s273 + $0x34] sm:$0xf]
        %v362 = vld [vmem:[%s273 + $0x38] sm:$0xf]
        %v363 = vld [vmem:[%s273 + $0x3c] sm:$0xf]
        %v364 = vld [vmem:[%s313] sm:$0x1]
        %v366 = vlaneseq
        %v367 = vshrl.u32 %v366, 7
        %v368 = vsub.s32 0, %v367
        %v369 = vrot.slane %v364, %v368
        %v387 = vunpack.c.l.b16 %v348
        %v388 = vunpack.c.l.b16 %v349
        %v389 = vunpack.c.l.b16 %v350
        %v390 = vunpack.c.l.b16 %v351
        %v391 = vunpack.c.l.b16 %v352
        %v392 = vunpack.c.l.b16 %v353
        %v393 = vunpack.c.l.b16 %v354
        %v394 = vunpack.c.l.b16 %v355
        %v395 = vunpack.c.l.b16 %v356
        %v396 = vunpack.c.l.b16 %v357
        %v397 = vunpack.c.l.b16 %v358
        %v398 = vunpack.c.l.b16 %v359
        %v399 = vunpack.c.l.b16 %v360
        %v400 = vunpack.c.l.b16 %v361
        %v401 = vunpack.c.l.b16 %v362
        %v402 = vunpack.c.l.b16 %v363
        %v403 = vpack.c.b16 %v388, %v387
        %v404 = vpack.c.b16 %v390, %v389
        %v405 = vpack.c.b16 %v392, %v391
        %v406 = vpack.c.b16 %v394, %v393
        %v407 = vpack.c.b16 %v396, %v395
        %v408 = vpack.c.b16 %v398, %v397
        %v409 = vpack.c.b16 %v400, %v399
        %v410 = vpack.c.b16 %v402, %v401
        %419 = vmatprep.subr.bf16.mxu0 0
        %420 = vmatpush1.bf16.msra.mxu0 %v410
        %421 = vmatprep.subr.bf16.mxu0 0
        %422 = vmatpush1.bf16.msra.mxu0 %v409
        %423 = vmatprep.subr.bf16.mxu0 0
        %424 = vmatpush1.bf16.msra.mxu0 %v408
        %425 = vmatprep.subr.bf16.mxu0 0
        %426 = vmatpush1.bf16.msra.mxu0 %v407
        %427 = vmatprep.subr.bf16.mxu0 0
        %428 = vmatpush1.bf16.msra.mxu0 %v406
        %429 = vmatprep.subr.bf16.mxu0 0
        %430 = vmatpush1.bf16.msra.mxu0 %v405
        %431 = vmatprep.subr.bf16.mxu0 0
        %432 = vmatpush1.bf16.msra.mxu0 %v404
        %433 = vmatprep.subr.bf16.mxu0 0
        %434 = vmatpush1.bf16.msra.mxu0 %v403
        %435 = vmatprep.subr.bf16.mxu0 0
        %436 = vmatpush2.bf16.msra.mxu0 0
        %437 = vmatprep.subr.bf16.mxu0 0
        %438 = vmatpush2.bf16.msra.mxu0 0
        %439 = vmatprep.subr.bf16.mxu0 0
        %440 = vmatpush2.bf16.msra.mxu0 0
        %441 = vmatprep.subr.bf16.mxu0 0
        %442 = vmatpush2.bf16.msra.mxu0 0
        %443 = vmatprep.subr.bf16.mxu0 0
        %444 = vmatpush2.bf16.msra.mxu0 0
        %445 = vmatprep.subr.bf16.mxu0 0
        %446 = vmatpush2.bf16.msra.mxu0 0
        %447 = vmatprep.subr.bf16.mxu0 0
        %448 = vmatpush2.bf16.msra.mxu0 0
        %449 = vmatprep.subr.bf16.mxu0 0
        %450 = vmatpush2.bf16.msra.mxu0 0
        %451 = vmatprep.mubr.bf16.mxu0 0
        %452 = vmatmul.mubr.bf16.gmra.mxu0 %v347
        %v453 = vpop.f32.mrf.mxu0
        %v454 = vadd.f32 %v369, %v453
        %v455 = vpop.f32.mrf.mxu0
        %v456 = vpop.f32.mrf.mxu0
        %v457 = vadd.f32 %v369, %v456
        %v458 = vpop.f32.mrf.mxu0
        %459 = vdwg.mxu0
        %v460 = vtanh.pop %v454
        %v461 = vtanh.pop %v457
        %v462 = vadd.f32 %v460, %v345
        %v463 = vadd.f32 %v461, %v346
        %464 = vst [vmem:[#allocation2] sm:$0xff] %v462
        %465 = vst [vmem:[#allocation2 + $0x8] sm:$0xff] %v463
        // Predicated region
        $region53: #{tpu_custom_call.1} parent=35 // pred_check
          %p466 = pneg %p315
        $region54: #{tpu_custom_call.1} parent=35 // pred_check_branch
          %468 = sbr.rel (%p466) target = $region56
        $region55: #{tpu_custom_call.1} parent=35 // pred_region
          %v469 = vld [vmem:[#allocation3] sm:$0xff]
          %v470 = vpack.c.bf16 %v469, %v469
          %v471 = vpack.c.bf16 %v463, %v462
          %vm472 = vcmask 130048
          %v474 = vsel %vm472, %v470, 0
          %476 = vmatprep.subr.bf16.mxu0 0
          %477 = vmatpush1.bf16.msra.mxu0 0
          %478 = vmatprep.subr.bf16.mxu0 0
          %479 = vmatpush1.bf16.msra.mxu0 0
          %480 = vmatprep.subr.bf16.mxu0 0
          %481 = vmatpush1.bf16.msra.mxu0 0
          %482 = vmatprep.subr.bf16.mxu0 0
          %483 = vmatpush1.bf16.msra.mxu0 0
          %484 = vmatprep.subr.bf16.mxu0 0
          %485 = vmatpush1.bf16.msra.mxu0 0
          %486 = vmatprep.subr.bf16.mxu0 0
          %487 = vmatpush1.bf16.msra.mxu0 0
          %488 = vmatprep.subr.bf16.mxu0 0
          %489 = vmatpush1.bf16.msra.mxu0 0
          %490 = vmatprep.subr.bf16.mxu0 0
          %491 = vmatpush1.bf16.msra.mxu0 %v471
          %492 = vmatprep.subr.bf16.mxu0 0
          %493 = vmatpush2.bf16.msra.mxu0 0
          %494 = vmatprep.subr.bf16.mxu0 0
          %495 = vmatpush2.bf16.msra.mxu0 0
          %496 = vmatprep.subr.bf16.mxu0 0
          %497 = vmatpush2.bf16.msra.mxu0 0
          %498 = vmatprep.subr.bf16.mxu0 0
          %499 = vmatpush2.bf16.msra.mxu0 0
          %500 = vmatprep.subr.bf16.mxu0 0
          %501 = vmatpush2.bf16.msra.mxu0 0
          %502 = vmatprep.subr.bf16.mxu0 0
          %503 = vmatpush2.bf16.msra.mxu0 0
          %504 = vmatprep.subr.bf16.mxu0 0
          %505 = vmatpush2.bf16.msra.mxu0 0
          %506 = vmatprep.subr.bf16.mxu0 0
          %507 = vmatpush2.bf16.msra.mxu0 0
          %508 = vmatprep.mubr.bf16.mxu0 0
          %509 = vmatmul.mubr.bf16.gmra.mxu0 %v474
          %v510 = vpop.f32.mrf.mxu0
          %v511 = vadd.f32 0.0, %v510
          %v512 = vpop.f32.mrf.mxu0
          %v513 = vpop.f32.mrf.mxu0
          %v514 = vpop.f32.mrf.mxu0
          %515 = vdwg.mxu0
          %v516 = vld [vmem:[#allocation4] sm:$0xff]
          %518 = vset.pattern.permute.xlu0 0
          %519 = vperm.xlu0 %518, %v516
          %v520 = vpop.permute.xlu0 %519
          %v522 = vmul.f32 %v511, %v520
          %523 = vst [vmem:[%s309] sm:$0xff] %v522
        $region56: #{tpu_custom_call.1} parent=35 // pred_fallthru
          _
        %p524 = scmp.eq.s32.totalorder %s29, 1
        // Predicated region
        $region57: #{tpu_custom_call.1} parent=35 // pred_check
          %p525 = pneg %p524
        $region58: #{tpu_custom_call.1} parent=35 // pred_check_branch
          %527 = sbr.rel (%p525) target = $region60
        $region59: #{tpu_custom_call.1} parent=35 // pred_region
          %v528 = vld [vmem:[#allocation3] sm:$0xff]
          %v529 = vpack.c.bf16 %v528, %v528
          %v530 = vpack.c.bf16 %v463, %v462
          %vm531 = vcmask 130048
          %v533 = vsel %vm531, %v529, 0
          %535 = vmatprep.subr.bf16.mxu0 0
          %536 = vmatpush1.bf16.msra.mxu0 0
          %537 = vmatprep.subr.bf16.mxu0 0
          %538 = vmatpush1.bf16.msra.mxu0 0
          %539 = vmatprep.subr.bf16.mxu0 0
          %540 = vmatpush1.bf16.msra.mxu0 0
          %541 = vmatprep.subr.bf16.mxu0 0
          %542 = vmatpush1.bf16.msra.mxu0 0
          %543 = vmatprep.subr.bf16.mxu0 0
          %544 = vmatpush1.bf16.msra.mxu0 0
          %545 = vmatprep.subr.bf16.mxu0 0
          %546 = vmatpush1.bf16.msra.mxu0 0
          %547 = vmatprep.subr.bf16.mxu0 0
          %548 = vmatpush1.bf16.msra.mxu0 0
          %549 = vmatprep.subr.bf16.mxu0 0
          %550 = vmatpush1.bf16.msra.mxu0 %v530
          %551 = vmatprep.subr.bf16.mxu0 0
          %552 = vmatpush2.bf16.msra.mxu0 0
          %553 = vmatprep.subr.bf16.mxu0 0
          %554 = vmatpush2.bf16.msra.mxu0 0
          %555 = vmatprep.subr.bf16.mxu0 0
          %556 = vmatpush2.bf16.msra.mxu0 0
          %557 = vmatprep.subr.bf16.mxu0 0
          %558 = vmatpush2.bf16.msra.mxu0 0
          %559 = vmatprep.subr.bf16.mxu0 0
          %560 = vmatpush2.bf16.msra.mxu0 0
          %561 = vmatprep.subr.bf16.mxu0 0
          %562 = vmatpush2.bf16.msra.mxu0 0
          %563 = vmatprep.subr.bf16.mxu0 0
          %564 = vmatpush2.bf16.msra.mxu0 0
          %565 = vmatprep.subr.bf16.mxu0 0
          %566 = vmatpush2.bf16.msra.mxu0 0
          %567 = vmatprep.mubr.bf16.mxu0 0
          %568 = vmatmul.mubr.bf16.gmra.mxu0 %v533
          %v569 = vpop.f32.mrf.mxu0
          %v570 = vadd.f32 0.0, %v569
          %v571 = vpop.f32.mrf.mxu0
          %v572 = vpop.f32.mrf.mxu0
          %v573 = vpop.f32.mrf.mxu0
          %574 = vdwg.mxu0
          %v575 = vld [vmem:[#allocation4] sm:$0xff]
          %577 = vset.pattern.permute.xlu0 0
          %578 = vperm.xlu0 %577, %v575
          %v579 = vpop.permute.xlu0 %578
          %v581 = vmul.f32 %v570, %v579
          %s582 = scalar_lea.vmem %s309, 8 [#allocation11]
          %583 = vst [vmem:[%s582] sm:$0xff] %v581
        $region60: #{tpu_custom_call.1} parent=35 // pred_fallthru
          _
        %s584 = sand.u32 %s148, 1
        %s585 = scalar_lea.sflag [#allocation7], %s584
        %s586 = sand.u32 %s148, 1
        %s587 = smul.addr %s586, 16
        %s588 = scalar_lea.vmem [#allocation11], %s587
        // Predicated region
        $region61: #{tpu_custom_call.1} parent=35 // pred_check
          %p589 = pneg %p158
        $region62: #{tpu_custom_call.1} parent=35 // pred_check_branch
          %591 = sbr.rel (%p589) target = $region64
        $region63: #{tpu_custom_call.1} parent=35 // pred_region
          %s593 = ssub.s32 256, 256
          %594 = vsyncadd %s585, %s593
          %s595 = smul.addr %s28, 128
          %s596 = scalar_lea.hbm %s4, %s595
          %s597 = sshll.u32 %s588, 4
          %s598 = int_to_ptr.vmem [resolvable:$true] %s597
          %603 = dma.vmem_to_hbm [thread:$0]  %s598, 256, %s596, %s585, 128, 256, 8
        $region64: #{tpu_custom_call.1} parent=35 // pred_fallthru
          _
      $region36: #{tpu_custom_call.1} parent=5 // pred_fallthru
        _
      %p604 = scmp.le.s32.totalorder 2, %s19
      // Predicated region
      $region65: #{tpu_custom_call.1} parent=5 // pred_check
        %p605 = pneg %p604
      $region66: #{tpu_custom_call.1} parent=5 // pred_check_branch
        %607 = sbr.rel (%p605) target = $region68
      $region67: #{tpu_custom_call.1} parent=5 // pred_region
        %s608 = ssub.s32 %s19, 2
        // Predicated region
        $region69: #{tpu_custom_call.1} parent=67 // pred_check
          %p609 = pneg %p164
        $region70: #{tpu_custom_call.1} parent=67 // pred_check_branch
          %611 = sbr.rel (%p609) target = $region72
        $region71: #{tpu_custom_call.1} parent=67 // pred_region
          %s612 = sand.u32 %s149, 1
          %s613 = scalar_lea.sflag [#allocation7], %s612
          %s614 = sand.u32 %s149, 1
          %s615 = smul.addr %s614, 16
          %s616 = scalar_lea.vmem [#allocation11], %s615
          %617 = dma.done %s613, 256
        $region72: #{tpu_custom_call.1} parent=67 // pred_fallthru
          _
      $region68: #{tpu_custom_call.1} parent=5 // pred_fallthru
        _
    $region6: #{tpu_custom_call.1} parent=1 // loop_footer
      %s23 = sadd.s32 1, %s19
    $region7: #{tpu_custom_call.1} parent=1 // loop_footer_branch
      %18 = sbr.rel target = $region3
    $region8: #{tpu_custom_call.1} parent=1 // loop_exit
      _
    %618 = vsyncpa [#allocation6], 1
    %s619 = scalar_lea.sflag [#allocation6], 1
    %620 = vsyncpa %s619, 1
    %621 = vsyncpa [#allocation9], 1
    %s622 = scalar_lea.sflag [#allocation9], 1
    %623 = vsyncpa %s622, 1
    %624 = vsyncpa [#allocation7], 1
    %s625 = scalar_lea.sflag [#allocation7], 1
    %626 = vsyncpa %s625, 1

</llo_original>
